<compile_context>
chip_gen: v7x
topology: tpu7x:2x2x1
jax: 0.10.0
libtpu: 0.0.40
codegen_flags: <defaults>
</compile_context>

<pallas_src>
import jax
import jax.numpy as jnp
from jax import lax
from jax.experimental import pallas as pl
from jax.experimental.pallas import tpu as pltpu


def _round_up(x, m):
    return -(-x // m) * m


def _vmem_capacity_bytes():
    try:
        info = pltpu.get_tpu_info()
        return int(getattr(info, "vmem_capacity_bytes", 128 << 20))
    except Exception:
        return 128 << 20


def _make_kernel(g_seq, rows, br, c, sub, fold, needs_mask):
    """Build the reduction kernel with all tiling constants baked in."""

    def kernel(p_ref, t_ref, max_ref, sabs_ref, ssq_ref,
               acc_max, acc_abs, acc_sq):
        i = pl.program_id(0)
        j = pl.program_id(1)

        # Elementwise hot path in f32 (VPU work, co-issues with vector loads).
        d = p_ref[...].astype(jnp.float32) - t_ref[...].astype(jnp.float32)
        ad = jnp.abs(d)
        sq = d * d

        if needs_mask:
            # Only the global-last block is ragged; rows beyond `rows` read
            # unspecified data and must contribute nothing.
            gb = i * g_seq + j
            valid = rows - gb * br            # > br for all full blocks
            row = lax.broadcasted_iota(jnp.int32, (br, c), 0)
            keep = row < valid
            ad = jnp.where(keep, ad, 0.0)
            sq = jnp.where(keep, sq, 0.0)

        if fold > 1:
            # (br, c) -> (fold, 8, c): tile-aligned free view; axis-0
            # reductions are vreg-wise VPU max/add (no XLU, no extra VMEM).
            ad3 = ad.reshape(fold, sub, c)
            sq3 = sq.reshape(fold, sub, c)
            blk_max = jnp.max(ad3, axis=0)
            blk_abs = jnp.sum(ad3, axis=0)
            blk_sq = jnp.sum(sq3, axis=0)
        else:
            blk_max = ad
            blk_abs = ad
            blk_sq = sq

        # First sequential step of this parallel slice: write directly
        # (no zero-fill + read-modify-write).
        @pl.when(j == 0)
        def _first():
            acc_max[...] = blk_max
            acc_abs[...] = blk_abs
            acc_sq[...] = blk_sq

        @pl.when(j != 0)
        def _accum():
            acc_max[...] = jnp.maximum(acc_max[...], blk_max)
            acc_abs[...] = acc_abs[...] + blk_abs
            acc_sq[...] = acc_sq[...] + blk_sq

        # Single cross-lane (XLU) reduction + SMEM scalar store per slice,
        # over a small (sub, c) accumulator (~32 KiB, not the whole block).
        @pl.when(j == pl.num_programs(1) - 1)
        def _final():
            max_ref[0, 0] = jnp.max(acc_max[...])
            sabs_ref[0, 0] = jnp.sum(acc_abs[...])
            ssq_ref[0, 0] = jnp.sum(acc_sq[...])

    return kernel


def _choose_layout(n_total, vmem_cap):
    """Pick lane width c, (tiny) lane pad, row count, block rows and grid split."""
    c = None
    for cand in (1024, 512, 256, 128):
        if n_total % cand == 0:
            c = cand
            break
    pad = 0
    if c is None:
        # Rare fallback: element count not a multiple of 128; pad a few
        # lanes so the flat array can be viewed as (rows, 128).
        c = 128
        pad = _round_up(n_total, c) - n_total
    rows = (n_total + pad) // c

    # ~8 MiB input blocks on 128-MiB-VMEM parts (v5e/v6e), ~4 MiB on v7x.
    target_br = 2048 if vmem_cap >= (96 << 20) else 1024

    if rows <= target_br:
        br = rows                       # single block == full first dim
        nb = 1
    else:
        br = target_br
        nb = -(-rows // br)
        if nb >= 2 and nb % 2 == 1:
            # Rebalance so the block count is even -> clean 2-way split for
            # v7x's two TensorCores on the "parallel" axis.
            br_try = _round_up(-(-rows // (nb + 1)), 8)
            if (-(-rows // br_try)) % 2 == 0:
                br = br_try
                nb = -(-rows // br)

    g_par = 2 if (nb >= 2 and nb % 2 == 0) else 1
    g_seq = nb // g_par
    return c, pad, rows, br, nb, g_par, g_seq


def _huber_reductions(pred_flat, truth_flat, n_total):
    cap = _vmem_capacity_bytes()
    c, pad, rows, br, nb, g_par, g_seq = _choose_layout(n_total, cap)

    if pad > 0:
        # Identical zero-pad on both inputs => diff == 0 on the tail, which
        # contributes nothing to max|d| / sum|d| / sum d^2.  (< c elements.)
        pred_flat = jnp.pad(pred_flat, (0, pad))
        truth_flat = jnp.pad(truth_flat, (0, pad))

    pred2d = pred_flat.reshape(rows, c)
    truth2d = truth_flat.reshape(rows, c)

    sub = 8 if br % 8 == 0 else br      # accumulator sublane height
    fold = br // sub
    needs_mask = (rows % br) != 0       # only then is the last block ragged

    block_bytes = br * c * 4
    acc_bytes = 3 * sub * c * 4
    # 2 inputs x 2 pipeline buffers + small accumulators + slack, capped at
    # physical VMEM (64 MiB on v7x, 128 MiB on v5e/v6e).
    vmem_limit = int(min(cap, 4 * block_bytes + acc_bytes + (16 << 20)))

    kernel = _make_kernel(g_seq, rows, br, c, sub, fold, needs_mask)

    scalar_out = jax.ShapeDtypeStruct((g_par, 1), jnp.float32)
    scalar_spec = pl.BlockSpec((1, 1), lambda i, j: (i, 0),
                               memory_space=pltpu.SMEM)
    in_spec = pl.BlockSpec((br, c), lambda i, j: (i * g_seq + j, 0))

    max_p, sabs_p, ssq_p = pl.pallas_call(
        kernel,
        out_shape=(scalar_out, scalar_out, scalar_out),
        grid_spec=pltpu.PrefetchScalarGridSpec(
            num_scalar_prefetch=0,
            grid=(g_par, g_seq),
            in_specs=[in_spec, in_spec],
            out_specs=(scalar_spec, scalar_spec, scalar_spec),
            scratch_shapes=[pltpu.VMEM((sub, c), jnp.float32)] * 3,
        ),
        compiler_params=pltpu.CompilerParams(
            # Leading axis "parallel" -> megacore sharding on v7x (2 TCs);
            # harmless on single-TC v5e/v6e.
            dimension_semantics=("parallel", "arbitrary"),
            vmem_limit_bytes=vmem_limit,
        ),
    )(pred2d, truth2d)

    # Combine the handful of per-slice partials in plain JAX.
    return jnp.max(max_p), jnp.sum(sabs_p), jnp.sum(ssq_p)


def loss_huber(pred, truth):
    """pred, truth: NCHW arrays (same shape). Returns scalar f32 loss."""
    n, ch, h, w = pred.shape
    n_total = n * ch * h * w

    max_abs, sum_abs, sum_sq = _huber_reductions(
        pred.reshape(-1), truth.reshape(-1), n_total)

    n_elems = jnp.float32(n_total)
    mean_abs = sum_abs / n_elems          # mean over dim1 then dim0 (rows equal-sized)
    mean_sq = sum_sq / n_elems
    t = 0.2 * max_abs
    l1 = mean_abs
    l2 = (mean_sq + t * t) / (2.0 * t)
    # NOTE: if pred == truth everywhere, t == 0 and l2 is NaN; where() returns
    # l1, matching the PyTorch forward value (backward would need an epsilon).
    return jnp.where(l1 > t, l2, l1)


if __name__ == "__main__":
    key = jax.random.PRNGKey(0)
    k1, k2 = jax.random.split(key)
    # small NCHW shapes consistent with the module's view(-1, c*h*w)
    pred = jax.random.normal(k1, (2, 4, 16, 16), dtype=jnp.float32)
    truth = jax.random.normal(k2, (2, 4, 16, 16), dtype=jnp.float32)

    out = loss_huber(pred, truth)
    out = jax.block_until_ready(out)

    # reference check (pure JAX)
    diff = (pred - truth).reshape(2, -1)
    t = 0.2 * jnp.max(jnp.abs(diff))
    l1 = jnp.mean(jnp.abs(diff))
    l2 = jnp.mean((diff ** 2 + t ** 2) / t / 2.0)
    ref = jnp.where(l1 > t, l2, l1)
    assert jnp.allclose(out, ref, rtol=1e-5, atol=1e-6), (out, ref)

    print("KERNEL_OK")
</pallas_src>

<mosaic_0001>
module attributes {stable_mosaic.version = 11 : i64} {
  func.func @kernel(%arg0: i32, %arg1: i32, %arg2: memref<2x1024xf32, #tpu.memory_space<vmem>>, %arg3: memref<2x1024xf32, #tpu.memory_space<vmem>>, %arg4: memref<1x1xf32, #tpu.memory_space<smem>>, %arg5: memref<1x1xf32, #tpu.memory_space<smem>>, %arg6: memref<1x1xf32, #tpu.memory_space<smem>>, %arg7: memref<2x1024xf32, #tpu.memory_space<vmem>>, %arg8: memref<2x1024xf32, #tpu.memory_space<vmem>>, %arg9: memref<2x1024xf32, #tpu.memory_space<vmem>>) attributes {dimension_semantics = [#tpu.dimension_semantics<parallel>, #tpu.dimension_semantics<arbitrary>], iteration_bounds = array<i64: 1, 1>, scalar_prefetch = 0 : i64, scratch_operands = 3 : i64, tpu.core_type = #tpu.core_type<tc>, window_params = [{transform_indices = @transform_0, window_bounds = array<i64: 2, 1024>}, {transform_indices = @transform_1, window_bounds = array<i64: 2, 1024>}, {transform_indices = @transform_2, window_bounds = array<i64: 1, 1>}, {transform_indices = @transform_3, window_bounds = array<i64: 1, 1>}, {transform_indices = @transform_4, window_bounds = array<i64: 1, 1>}]} {
    %c0 = arith.constant 0 : index
    %c0_0 = arith.constant 0 : index
    %0 = vector.load %arg2[%c0, %c0_0] : memref<2x1024xf32, #tpu.memory_space<vmem>>, vector<2x1024xf32>
    %c0_1 = arith.constant 0 : index
    %c0_2 = arith.constant 0 : index
    %1 = vector.load %arg3[%c0_1, %c0_2] : memref<2x1024xf32, #tpu.memory_space<vmem>>, vector<2x1024xf32>
    %2 = arith.subf %0, %1 : vector<2x1024xf32>
    %3 = math.absf %2 : vector<2x1024xf32>
    %4 = arith.mulf %2, %2 : vector<2x1024xf32>
    %c0_i32 = arith.constant 0 : i32
    %5 = arith.cmpi eq, %arg1, %c0_i32 : i32
    %6 = arith.extui %5 : i1 to i32
    %c0_i32_3 = arith.constant 0 : i32
    %7 = arith.cmpi ne, %6, %c0_i32_3 : i32
    scf.if %7 {
      %c0_8 = arith.constant 0 : index
      %c0_9 = arith.constant 0 : index
      %14 = vector.load %arg7[%c0_8, %c0_9] : memref<2x1024xf32, #tpu.memory_space<vmem>>, vector<2x1024xf32>
      tpu.vector_store %arg7[%c0_8, %c0_9], %3 {strides = array<i32>} : memref<2x1024xf32, #tpu.memory_space<vmem>>, vector<2x1024xf32>,
      %c0_10 = arith.constant 0 : index
      %c0_11 = arith.constant 0 : index
      %15 = vector.load %arg8[%c0_10, %c0_11] : memref<2x1024xf32, #tpu.memory_space<vmem>>, vector<2x1024xf32>
      tpu.vector_store %arg8[%c0_10, %c0_11], %3 {strides = array<i32>} : memref<2x1024xf32, #tpu.memory_space<vmem>>, vector<2x1024xf32>,
      %c0_12 = arith.constant 0 : index
      %c0_13 = arith.constant 0 : index
      %16 = vector.load %arg9[%c0_12, %c0_13] : memref<2x1024xf32, #tpu.memory_space<vmem>>, vector<2x1024xf32>
      tpu.vector_store %arg9[%c0_12, %c0_13], %4 {strides = array<i32>} : memref<2x1024xf32, #tpu.memory_space<vmem>>, vector<2x1024xf32>,
    } else {
    }
    %c0_i32_4 = arith.constant 0 : i32
    %8 = arith.cmpi ne, %arg1, %c0_i32_4 : i32
    %9 = arith.extui %8 : i1 to i32
    %c0_i32_5 = arith.constant 0 : i32
    %10 = arith.cmpi ne, %9, %c0_i32_5 : i32
    scf.if %10 {
      %c0_8 = arith.constant 0 : index
      %c0_9 = arith.constant 0 : index
      %14 = vector.load %arg7[%c0_8, %c0_9] : memref<2x1024xf32, #tpu.memory_space<vmem>>, vector<2x1024xf32>
      %15 = arith.maximumf %14, %3 : vector<2x1024xf32>
      %c0_10 = arith.constant 0 : index
      %c0_11 = arith.constant 0 : index
      %16 = vector.load %arg7[%c0_10, %c0_11] : memref<2x1024xf32, #tpu.memory_space<vmem>>, vector<2x1024xf32>
      tpu.vector_store %arg7[%c0_10, %c0_11], %15 {strides = array<i32>} : memref<2x1024xf32, #tpu.memory_space<vmem>>, vector<2x1024xf32>,
      %c0_12 = arith.constant 0 : index
      %c0_13 = arith.constant 0 : index
      %17 = vector.load %arg8[%c0_12, %c0_13] : memref<2x1024xf32, #tpu.memory_space<vmem>>, vector<2x1024xf32>
      %18 = arith.addf %17, %3 : vector<2x1024xf32>
      %c0_14 = arith.constant 0 : index
      %c0_15 = arith.constant 0 : index
      %19 = vector.load %arg8[%c0_14, %c0_15] : memref<2x1024xf32, #tpu.memory_space<vmem>>, vector<2x1024xf32>
      tpu.vector_store %arg8[%c0_14, %c0_15], %18 {strides = array<i32>} : memref<2x1024xf32, #tpu.memory_space<vmem>>, vector<2x1024xf32>,
      %c0_16 = arith.constant 0 : index
      %c0_17 = arith.constant 0 : index
      %20 = vector.load %arg9[%c0_16, %c0_17] : memref<2x1024xf32, #tpu.memory_space<vmem>>, vector<2x1024xf32>
      %21 = arith.addf %20, %4 : vector<2x1024xf32>
      %c0_18 = arith.constant 0 : index
      %c0_19 = arith.constant 0 : index
      %22 = vector.load %arg9[%c0_18, %c0_19] : memref<2x1024xf32, #tpu.memory_space<vmem>>, vector<2x1024xf32>
      tpu.vector_store %arg9[%c0_18, %c0_19], %21 {strides = array<i32>} : memref<2x1024xf32, #tpu.memory_space<vmem>>, vector<2x1024xf32>,
    } else {
    }
    %c0_i32_6 = arith.constant 0 : i32
    %11 = arith.cmpi eq, %arg1, %c0_i32_6 : i32
    %12 = arith.extui %11 : i1 to i32
    %c0_i32_7 = arith.constant 0 : i32
    %13 = arith.cmpi ne, %12, %c0_i32_7 : i32
    scf.if %13 {
      %c0_8 = arith.constant 0 : index
      %c0_9 = arith.constant 0 : index
      %14 = vector.load %arg7[%c0_8, %c0_9] : memref<2x1024xf32, #tpu.memory_space<vmem>>, vector<2x1024xf32>
      %15 = vector.shape_cast %14 : vector<2x1024xf32> to vector<1x2x1024xf32>
      %cst = arith.constant dense<0xFF800000> : vector<1xf32>
      %16 = vector.multi_reduction <maximumf>, %15, %cst [1, 2] : vector<1x2x1024xf32> to vector<1xf32>
      %17 = vector.shape_cast %16 : vector<1xf32> to vector<1x1x1xf32>
      %18 = vector.extract %17[0, 0, 0] : f32 from vector<1x1x1xf32>
      %c0_10 = arith.constant 0 : index
      %c0_11 = arith.constant 0 : index
      %19 = memref.load %arg4[%c0_10, %c0_11] : memref<1x1xf32, #tpu.memory_space<smem>>
      memref.store %18, %arg4[%c0_10, %c0_11] : memref<1x1xf32, #tpu.memory_space<smem>>
      %c0_12 = arith.constant 0 : index
      %c0_13 = arith.constant 0 : index
      %20 = vector.load %arg8[%c0_12, %c0_13] : memref<2x1024xf32, #tpu.memory_space<vmem>>, vector<2x1024xf32>
      %21 = vector.shape_cast %20 : vector<2x1024xf32> to vector<1x2x1024xf32>
      %cst_14 = arith.constant dense<0.000000e+00> : vector<1xf32>
      %22 = vector.multi_reduction <add>, %21, %cst_14 [1, 2] : vector<1x2x1024xf32> to vector<1xf32>
      %23 = vector.shape_cast %22 : vector<1xf32> to vector<1x1x1xf32>
      %24 = vector.extract %23[0, 0, 0] : f32 from vector<1x1x1xf32>
      %c0_15 = arith.constant 0 : index
      %c0_16 = arith.constant 0 : index
      %25 = memref.load %arg5[%c0_15, %c0_16] : memref<1x1xf32, #tpu.memory_space<smem>>
      memref.store %24, %arg5[%c0_15, %c0_16] : memref<1x1xf32, #tpu.memory_space<smem>>
      %c0_17 = arith.constant 0 : index
      %c0_18 = arith.constant 0 : index
      %26 = vector.load %arg9[%c0_17, %c0_18] : memref<2x1024xf32, #tpu.memory_space<vmem>>, vector<2x1024xf32>
      %27 = vector.shape_cast %26 : vector<2x1024xf32> to vector<1x2x1024xf32>
      %cst_19 = arith.constant dense<0.000000e+00> : vector<1xf32>
      %28 = vector.multi_reduction <add>, %27, %cst_19 [1, 2] : vector<1x2x1024xf32> to vector<1xf32>
      %29 = vector.shape_cast %28 : vector<1xf32> to vector<1x1x1xf32>
      %30 = vector.extract %29[0, 0, 0] : f32 from vector<1x1x1xf32>
      %c0_20 = arith.constant 0 : index
      %c0_21 = arith.constant 0 : index
      %31 = memref.load %arg6[%c0_20, %c0_21] : memref<1x1xf32, #tpu.memory_space<smem>>
      memref.store %30, %arg6[%c0_20, %c0_21] : memref<1x1xf32, #tpu.memory_space<smem>>
    } else {
    }
    return
  }
  func.func @transform_0(%arg0: i32, %arg1: i32) -> (i32, i32) {
    %c1_i32 = arith.constant 1 : i32
    %0 = arith.muli %arg0, %c1_i32 : i32
    %1 = arith.addi %0, %arg1 : i32
    %c0_i32 = arith.constant 0 : i32
    %c0_i32_0 = arith.constant 0 : i32
    return %1, %c0_i32 : i32, i32
  }
  func.func @transform_1(%arg0: i32, %arg1: i32) -> (i32, i32) {
    %c1_i32 = arith.constant 1 : i32
    %0 = arith.muli %arg0, %c1_i32 : i32
    %1 = arith.addi %0, %arg1 : i32
    %c0_i32 = arith.constant 0 : i32
    %c0_i32_0 = arith.constant 0 : i32
    return %1, %c0_i32 : i32, i32
  }
  func.func @transform_2(%arg0: i32, %arg1: i32) -> (i32, i32) {
    %c0_i32 = arith.constant 0 : i32
    %c0_i32_0 = arith.constant 0 : i32
    return %arg0, %c0_i32 : i32, i32
  }
  func.func @transform_3(%arg0: i32, %arg1: i32) -> (i32, i32) {
    %c0_i32 = arith.constant 0 : i32
    %c0_i32_0 = arith.constant 0 : i32
    return %arg0, %c0_i32 : i32, i32
  }
  func.func @transform_4(%arg0: i32, %arg1: i32) -> (i32, i32) {
    %c0_i32 = arith.constant 0 : i32
    %c0_i32_0 = arith.constant 0 : i32
    return %arg0, %c0_i32 : i32, i32
  }
}

</mosaic_0001>

<llo_original>
// kernel: tpu_custom_call.1
$region0: #{tpu_custom_call.1}
  #allocation0 [shape = 'u32[]', space=smem, size = 0x4, offset = 0x4, fixed_abs, tag = 'smem constant byte address 0x4 - core index']
  #allocation1 [shape = 'u32[144,128]{1,0:T(1,128)}', space=vmem, size = 0x12000, scoped, tag = 'internal scratch']
  #allocation2 [shape = 'f32[2,1024]{1,0:T(2,128)}', space=vmem, size = 0x2000, scoped, tag = 'scratch operand']
  #allocation3 [shape = 'f32[2,1024]{1,0:T(2,128)}', space=vmem, size = 0x2000, scoped, tag = 'scratch operand']
  #allocation4 [shape = 'f32[2,1024]{1,0:T(2,128)}', space=vmem, size = 0x2000, scoped, tag = 'scratch operand']
  %s0 = inlined_call_operand.hbm [shape: f32[2,1024], index: 0, kind: input, shape index: {}]
  %s1 = inlined_call_operand.hbm [shape: f32[2,1024], index: 1, kind: input, shape index: {}]
  %s2 = inlined_call_operand.hbm [shape: f32[1,1], index: 2, kind: output, shape index: {0}]
  %s3 = inlined_call_operand.hbm [shape: f32[1,1], index: 3, kind: output, shape index: {1}]
  %s4 = inlined_call_operand.hbm [shape: f32[1,1], index: 4, kind: output, shape index: {2}]
  %5 = xla_tuple %s2, %s3, %s4
  %s6 = sld [smem:[#allocation0]]
  $region54: #{tpu_custom_call.1} parent=0
    _
  %s8 = ssub.s32 1, %s6
  %s9 = scalar_select 0, %s8, %s6
  $region1: #{tpu_custom_call.1} parent=0
    #allocation5 [shape = 'u8[8192]{0}', space=vmem, size = 0x2000, scoped, tag = 'input window, operand 0, single buffered']
    #allocation6 [shape = 's32[1]{0}', space=sflag, size = 0x4, scoped, tag = 'scoped memory for tpu_custom_call.1']
    #allocation7 [shape = 's32[1]{0}', space=sflag, size = 0x4, scoped, tag = 'scoped memory for tpu_custom_call.1']
    #allocation8 [shape = 'u8[8192]{0}', space=vmem, size = 0x2000, scoped, tag = 'input window, operand 1, single buffered']
    #allocation9 [shape = 's32[1]{0}', space=sflag, size = 0x4, scoped, tag = 'scoped memory for tpu_custom_call.1']
    #allocation10 [shape = 'u8[512]{0}', space=smem, size = 0x200, scoped, tag = 'output window, operand 0, single buffered']
    #allocation11 [shape = 'u8[512]{0}', space=smem, size = 0x200, scoped, tag = 'output window, operand 1, single buffered']
    #allocation12 [shape = 's32[1]{0}', space=sflag, size = 0x4, scoped, tag = 'scoped memory for tpu_custom_call.1']
    #allocation13 [shape = 'u8[512]{0}', space=smem, size = 0x200, scoped, tag = 'output window, operand 2, single buffered']
    %10 = vsyncpa [#allocation6], 0
    %11 = vsyncpa [#allocation9], 0
    %12 = vsyncpa [#allocation7], 0
    %13 = vsyncpa [#allocation12], 0
    // Predicated region
    $region2: #{tpu_custom_call.1} parent=1 // pred_check
      _
    $region3: #{tpu_custom_call.1} parent=1 // pred_check_branch
      %15 = sbr.rel (0) target = $region5
    $region4: #{tpu_custom_call.1} parent=1 // pred_region
      %s16 = sadd.s32 0, 0
      %s18 = ssub.s32 256, 256
      %19 = vsyncadd [#allocation6], %s18
      %s20 = smul.addr %s16, 8
      %s21 = smul.addr %s20, 32
      %s22 = scalar_lea.hbm %s0, %s21
      %s24 = sshll.u32 [#allocation5], 4
      %s25 = int_to_ptr.vmem [resolvable:$true] %s24
      %27 = dma.hbm_to_vmem [thread:$0]  %s22, 256, %s25, [#allocation6]
    $region5: #{tpu_custom_call.1} parent=1 // pred_fallthru
      _
    // Predicated region
    $region6: #{tpu_custom_call.1} parent=1 // pred_check
      _
    $region7: #{tpu_custom_call.1} parent=1 // pred_check_branch
      %29 = sbr.rel (0) target = $region9
    $region8: #{tpu_custom_call.1} parent=1 // pred_region
      %s30 = sadd.s32 0, 0
      %s32 = ssub.s32 256, 256
      %33 = vsyncadd [#allocation9], %s32
      %s34 = smul.addr %s30, 8
      %s35 = smul.addr %s34, 32
      %s36 = scalar_lea.hbm %s1, %s35
      %s38 = sshll.u32 [#allocation8], 4
      %s39 = int_to_ptr.vmem [resolvable:$true] %s38
      %41 = dma.hbm_to_vmem [thread:$0]  %s36, 256, %s39, [#allocation9]
    $region9: #{tpu_custom_call.1} parent=1 // pred_fallthru
      _
    // Predicated region
    $region10: #{tpu_custom_call.1} parent=1 // pred_check
      _
    $region11: #{tpu_custom_call.1} parent=1 // pred_check_branch
      %43 = sbr.rel (0) target = $region13
    $region12: #{tpu_custom_call.1} parent=1 // pred_region
      %44 = dma.done [#allocation6], 256
    $region13: #{tpu_custom_call.1} parent=1 // pred_fallthru
      _
    // Predicated region
    $region14: #{tpu_custom_call.1} parent=1 // pred_check
      _
    $region15: #{tpu_custom_call.1} parent=1 // pred_check_branch
      %46 = sbr.rel (0) target = $region17
    $region16: #{tpu_custom_call.1} parent=1 // pred_region
      %47 = dma.done [#allocation9], 256
    $region17: #{tpu_custom_call.1} parent=1 // pred_fallthru
      _
    %s48 = sadd.s32 0, 0
    %s49 = sadd.s32 0, 0
    %v50 = vld [vmem:[#allocation5] sm:$0xff]
    %v51 = vld [vmem:[#allocation5 + $0x8] sm:$0xff]
    %v52 = vld [vmem:[#allocation8] sm:$0xff]
    %v53 = vld [vmem:[#allocation8 + $0x8] sm:$0xff]
    %v54 = vsub.f32 %v50, %v52
    %v55 = vsub.f32 %v51, %v53
    %v56 = vand.u32 2147483647, %v54
    %v57 = vand.u32 2147483647, %v55
    %v58 = vmul.f32 %v54, %v54
    %v59 = vmul.f32 %v55, %v55
    %p60 = scmp.eq.s32.totalorder 0, 0
    // Predicated region
    $region18: #{tpu_custom_call.1} parent=1 // pred_check
      %p61 = pneg %p60
    $region19: #{tpu_custom_call.1} parent=1 // pred_check_branch
      %63 = sbr.rel (%p61) target = $region21
    $region20: #{tpu_custom_call.1} parent=1 // pred_region
      %64 = vst [vmem:[#allocation2] sm:$0xff] %v56
      %65 = vst [vmem:[#allocation2 + $0x8] sm:$0xff] %v57
      %66 = vst [vmem:[#allocation3] sm:$0xff] %v56
      %67 = vst [vmem:[#allocation3 + $0x8] sm:$0xff] %v57
      %68 = vst [vmem:[#allocation4] sm:$0xff] %v58
      %69 = vst [vmem:[#allocation4 + $0x8] sm:$0xff] %v59
    $region21: #{tpu_custom_call.1} parent=1 // pred_fallthru
      _
    %p70 = scmp.ne.s32.totalorder 0, 0
    // Predicated region
    $region22: #{tpu_custom_call.1} parent=1 // pred_check
      %p71 = pneg %p70
    $region23: #{tpu_custom_call.1} parent=1 // pred_check_branch
      %73 = sbr.rel (%p71) target = $region25
    $region24: #{tpu_custom_call.1} parent=1 // pred_region
      %v74 = vld [vmem:[#allocation2] sm:$0xff]
      %v75 = vld [vmem:[#allocation2 + $0x8] sm:$0xff]
      %v76 = vmax.f32 %v74, %v56
      %v77 = vmax.f32 %v75, %v57
      %78 = vst [vmem:[#allocation2] sm:$0xff] %v76
      %79 = vst [vmem:[#allocation2 + $0x8] sm:$0xff] %v77
      %v80 = vld [vmem:[#allocation3] sm:$0xff]
      %v81 = vld [vmem:[#allocation3 + $0x8] sm:$0xff]
      %v82 = vadd.f32 %v80, %v56
      %v83 = vadd.f32 %v81, %v57
      %84 = vst [vmem:[#allocation3] sm:$0xff] %v82
      %85 = vst [vmem:[#allocation3 + $0x8] sm:$0xff] %v83
      %v86 = vld [vmem:[#allocation4] sm:$0xff]
      %v87 = vld [vmem:[#allocation4 + $0x8] sm:$0xff]
      %v88 = vadd.f32 %v86, %v58
      %v89 = vadd.f32 %v87, %v59
      %90 = vst [vmem:[#allocation4] sm:$0xff] %v88
      %91 = vst [vmem:[#allocation4 + $0x8] sm:$0xff] %v89
    $region25: #{tpu_custom_call.1} parent=1 // pred_fallthru
      _
    // Predicated region
    $region26: #{tpu_custom_call.1} parent=1 // pred_check
      %p92 = pneg %p60
    $region27: #{tpu_custom_call.1} parent=1 // pred_check_branch
      %94 = sbr.rel (%p92) target = $region29
    $region28: #{tpu_custom_call.1} parent=1 // pred_region
      %v95 = vld [vmem:[#allocation2] sm:$0xff]
      %v96 = vld [vmem:[#allocation2 + $0x8] sm:$0xff]
      %v99 = vcombine.high %v95, %v95
      %v101 = vunpack.c.l.s4 1983009808
      %v102 = vunpack.c.0.s8 %v101
      %v103 = vlaneseq
      %v104 = vshrl.u32 %v103, 7
      %v105 = vsub.s32 %v102, %v104
      %v106 = vrot.slane %v95, %v105
      %v108 = vunpack.c.l.s4 1983009808
      %v109 = vunpack.c.0.s8 %v108
      %v110 = vlaneseq
      %v111 = vshrl.u32 %v110, 7
      %v112 = vsub.s32 %v109, %v111
      %v113 = vrot.slane %v99, %v112
      %v114 = vcombine.high %v106, %v106
      %v115 = vcombine.high %v113, %v113
      %v116 = vcombine.high %v96, %v96
      %v118 = vunpack.c.l.s4 1983009808
      %v119 = vunpack.c.0.s8 %v118
      %v120 = vlaneseq
      %v121 = vshrl.u32 %v120, 7
      %v122 = vsub.s32 %v119, %v121
      %v123 = vrot.slane %v96, %v122
      %v125 = vunpack.c.l.s4 1983009808
      %v126 = vunpack.c.0.s8 %v125
      %v127 = vlaneseq
      %v128 = vshrl.u32 %v127, 7
      %v129 = vsub.s32 %v126, %v128
      %v130 = vrot.slane %v116, %v129
      %v131 = vcombine.high %v123, %v123
      %v132 = vcombine.high %v130, %v130
      %vm141 = vcmask 1041408
      %v142 = vsel %vm141, %v106, -inf
      %v143 = vsel %vm141, %v114, -inf
      %v144 = vsel %vm141, %v113, -inf
      %v145 = vsel %vm141, %v115, -inf
      %v146 = vsel %vm141, %v123, -inf
      %v147 = vmax.f32 %v142, %v146
      %v148 = vsel %vm141, %v131, -inf
      %v149 = vmax.f32 %v143, %v148
      %v150 = vsel %vm141, %v130, -inf
      %v151 = vmax.f32 %v144, %v150
      %v152 = vsel %vm141, %v132, -inf
      %v153 = vmax.f32 %v145, %v152
      %v154 = vmax.f32 %v147, %v149
      %v155 = vmax.f32 %v151, %v153
      %v156 = vmax.f32 %v154, %v155
      %157 = vmax.xlane.f32.xlu0 %v156
      %v158 = vpop.xlane.xlu0 %157
      %v159 = vrot.slane %v158, 4
      %v160 = vmax.f32 %v158, %v159
      %v161 = vrot.slane %v160, 2
      %v162 = vmax.f32 %v160, %v161
      %v163 = vrot.slane %v162, 1
      %v164 = vmax.f32 %v162, %v163
      %s165 = vtos %v164
      %s166 = scalar_lea.smem [#allocation10], 0
      %167 = sst [smem:[%s166]] %s165
      %v168 = vld [vmem:[#allocation3] sm:$0xff]
      %v169 = vld [vmem:[#allocation3 + $0x8] sm:$0xff]
      %v172 = vcombine.high %v168, %v168
      %v174 = vunpack.c.l.s4 1983009808
      %v175 = vunpack.c.0.s8 %v174
      %v176 = vlaneseq
      %v177 = vshrl.u32 %v176, 7
      %v178 = vsub.s32 %v175, %v177
      %v179 = vrot.slane %v168, %v178
      %v181 = vunpack.c.l.s4 1983009808
      %v182 = vunpack.c.0.s8 %v181
      %v183 = vlaneseq
      %v184 = vshrl.u32 %v183, 7
      %v185 = vsub.s32 %v182, %v184
      %v186 = vrot.slane %v172, %v185
      %v187 = vcombine.high %v179, %v179
      %v188 = vcombine.high %v186, %v186
      %v189 = vcombine.high %v169, %v169
      %v191 = vunpack.c.l.s4 1983009808
      %v192 = vunpack.c.0.s8 %v191
      %v193 = vlaneseq
      %v194 = vshrl.u32 %v193, 7
      %v195 = vsub.s32 %v192, %v194
      %v196 = vrot.slane %v169, %v195
      %v198 = vunpack.c.l.s4 1983009808
      %v199 = vunpack.c.0.s8 %v198
      %v200 = vlaneseq
      %v201 = vshrl.u32 %v200, 7
      %v202 = vsub.s32 %v199, %v201
      %v203 = vrot.slane %v189, %v202
      %v204 = vcombine.high %v196, %v196
      %v205 = vcombine.high %v203, %v203
      %v214 = vsel %vm141, %v179, 0.0
      %v215 = vsel %vm141, %v187, 0.0
      %v216 = vadd.f32 %v214, %v215
      %v217 = vsel %vm141, %v186, 0.0
      %v218 = vadd.f32 %v216, %v217
      %v219 = vsel %vm141, %v188, 0.0
      %v220 = vadd.f32 %v218, %v219
      %v221 = vsel %vm141, %v196, 0.0
      %v222 = vadd.f32 %v220, %v221
      %v223 = vsel %vm141, %v204, 0.0
      %v224 = vadd.f32 %v222, %v223
      %v225 = vsel %vm141, %v203, 0.0
      %v226 = vadd.f32 %v224, %v225
      %v227 = vsel %vm141, %v205, 0.0
      %v228 = vadd.f32 %v226, %v227
      %229 = vadd.xlane.f32.xlu0 %v228
      %v230 = vpop.xlane.xlu0 %229
      %v231 = vrot.slane %v230, 4
      %v232 = vadd.f32 %v230, %v231
      %v233 = vrot.slane %v232, 2
      %v234 = vadd.f32 %v232, %v233
      %v235 = vrot.slane %v234, 1
      %v236 = vadd.f32 %v234, %v235
      %s237 = vtos %v236
      %s238 = scalar_lea.smem [#allocation11], 0
      %239 = sst [smem:[%s238]] %s237
      %v240 = vld [vmem:[#allocation4] sm:$0xff]
      %v241 = vld [vmem:[#allocation4 + $0x8] sm:$0xff]
      %v244 = vcombine.high %v240, %v240
      %v246 = vunpack.c.l.s4 1983009808
      %v247 = vunpack.c.0.s8 %v246
      %v248 = vlaneseq
      %v249 = vshrl.u32 %v248, 7
      %v250 = vsub.s32 %v247, %v249
      %v251 = vrot.slane %v240, %v250
      %v253 = vunpack.c.l.s4 1983009808
      %v254 = vunpack.c.0.s8 %v253
      %v255 = vlaneseq
      %v256 = vshrl.u32 %v255, 7
      %v257 = vsub.s32 %v254, %v256
      %v258 = vrot.slane %v244, %v257
      %v259 = vcombine.high %v251, %v251
      %v260 = vcombine.high %v258, %v258
      %v261 = vcombine.high %v241, %v241
      %v263 = vunpack.c.l.s4 1983009808
      %v264 = vunpack.c.0.s8 %v263
      %v265 = vlaneseq
      %v266 = vshrl.u32 %v265, 7
      %v267 = vsub.s32 %v264, %v266
      %v268 = vrot.slane %v241, %v267
      %v270 = vunpack.c.l.s4 1983009808
      %v271 = vunpack.c.0.s8 %v270
      %v272 = vlaneseq
      %v273 = vshrl.u32 %v272, 7
      %v274 = vsub.s32 %v271, %v273
      %v275 = vrot.slane %v261, %v274
      %v276 = vcombine.high %v268, %v268
      %v277 = vcombine.high %v275, %v275
      %v286 = vsel %vm141, %v251, 0.0
      %v287 = vsel %vm141, %v259, 0.0
      %v288 = vadd.f32 %v286, %v287
      %v289 = vsel %vm141, %v258, 0.0
      %v290 = vadd.f32 %v288, %v289
      %v291 = vsel %vm141, %v260, 0.0
      %v292 = vadd.f32 %v290, %v291
      %v293 = vsel %vm141, %v268, 0.0
      %v294 = vadd.f32 %v292, %v293
      %v295 = vsel %vm141, %v276, 0.0
      %v296 = vadd.f32 %v294, %v295
      %v297 = vsel %vm141, %v275, 0.0
      %v298 = vadd.f32 %v296, %v297
      %v299 = vsel %vm141, %v277, 0.0
      %v300 = vadd.f32 %v298, %v299
      %301 = vadd.xlane.f32.xlu0 %v300
      %v302 = vpop.xlane.xlu0 %301
      %v303 = vrot.slane %v302, 4
      %v304 = vadd.f32 %v302, %v303
      %v305 = vrot.slane %v304, 2
      %v306 = vadd.f32 %v304, %v305
      %v307 = vrot.slane %v306, 1
      %v308 = vadd.f32 %v306, %v307
      %s309 = vtos %v308
      %s310 = scalar_lea.smem [#allocation13], 0
      %311 = sst [smem:[%s310]] %s309
    $region29: #{tpu_custom_call.1} parent=1 // pred_fallthru
      _
    // Predicated region
    $region30: #{tpu_custom_call.1} parent=1 // pred_check
      _
    $region31: #{tpu_custom_call.1} parent=1 // pred_check_branch
      %313 = sbr.rel (0) target = $region33
    $region32: #{tpu_custom_call.1} parent=1 // pred_region
      %s315 = ssub.s32 16, 16
      %316 = vsyncadd [#allocation7], %s315
      %319 = dma.smem_to_hbm [#allocation10], 16, %s2, [#allocation7]
    $region33: #{tpu_custom_call.1} parent=1 // pred_fallthru
      _
    // Predicated region
    $region34: #{tpu_custom_call.1} parent=1 // pred_check
      _
    $region35: #{tpu_custom_call.1} parent=1 // pred_check_branch
      %321 = sbr.rel (0) target = $region37
    $region36: #{tpu_custom_call.1} parent=1 // pred_region
      %s323 = ssub.s32 16, 16
      %324 = vsyncadd [#allocation12], %s323
      %327 = dma.smem_to_hbm [#allocation11], 16, %s3, [#allocation12]
    $region37: #{tpu_custom_call.1} parent=1 // pred_fallthru
      _
    // Predicated region
    $region38: #{tpu_custom_call.1} parent=1 // pred_check
      _
    $region39: #{tpu_custom_call.1} parent=1 // pred_check_branch
      %329 = sbr.rel (0) target = $region41
    $region40: #{tpu_custom_call.1} parent=1 // pred_region
      %s331 = ssub.s32 16, 16
      %332 = vsyncadd [#allocation12], %s331
      %335 = dma.smem_to_hbm [#allocation13], 16, %s4, [#allocation12]
    $region41: #{tpu_custom_call.1} parent=1 // pred_fallthru
      _
    // Predicated region
    $region42: #{tpu_custom_call.1} parent=1 // pred_check
      _
    $region43: #{tpu_custom_call.1} parent=1 // pred_check_branch
      %337 = sbr.rel (0) target = $region45
    $region44: #{tpu_custom_call.1} parent=1 // pred_region
      %338 = dma.done [#allocation7], 16
    $region45: #{tpu_custom_call.1} parent=1 // pred_fallthru
      _
    // Predicated region
    $region46: #{tpu_custom_call.1} parent=1 // pred_check
      _
    $region47: #{tpu_custom_call.1} parent=1 // pred_check_branch
      %340 = sbr.rel (0) target = $region49
    $region48: #{tpu_custom_call.1} parent=1 // pred_region
      %341 = dma.done [#allocation12], 16
    $region49: #{tpu_custom_call.1} parent=1 // pred_fallthru
      _
    // Predicated region
    $region50: #{tpu_custom_call.1} parent=1 // pred_check
      _
    $region51: #{tpu_custom_call.1} parent=1 // pred_check_branch
      %343 = sbr.rel (0) target = $region53
    $region52: #{tpu_custom_call.1} parent=1 // pred_region
      %344 = dma.done [#allocation12], 16
    $region53: #{tpu_custom_call.1} parent=1 // pred_fallthru
      _
    %345 = sfence
    %346 = vsyncpa [#allocation6], 1
    %347 = vsyncpa [#allocation9], 1
    %348 = vsyncpa [#allocation7], 1
    %349 = vsyncpa [#allocation12], 1

</llo_original>
